<compile_context>
chip_gen: v7x
topology: tpu7x:2x2x1
jax: 0.10.0
libtpu: 0.0.40
codegen_flags: <defaults>
</compile_context>

<pallas_src>
import jax
import jax.numpy as jnp
from jax.experimental import pallas as pl
from jax.experimental.pallas import tpu as pltpu


def _add2d_kernel(x_ref, y_ref, o_ref):
    # Elementwise add of the current VMEM tiles (VPU path).
    o_ref[...] = x_ref[...] + y_ref[...]


def _round_up(n, m):
    return ((n + m - 1) // m) * m


def _round_down(n, m):
    return (n // m) * m


def _tpu_generation():
    """Best-effort hardware query; falls back to conservative defaults."""
    is_v7x = False
    vmem_cap = None
    try:
        kind = jax.devices()[0].device_kind.lower()
        is_v7x = "v7" in kind
    except Exception:
        pass
    try:
        vmem_cap = int(pltpu.get_tpu_info().vmem_capacity_bytes)
    except Exception:
        vmem_cap = None
    return is_v7x, vmem_cap


def add2d(x, y, x_len, *, min_pallas_bytes=256 * 1024):
    """Pallas equivalent of Add2D.forward(string, string_len, string2, string2_len).

    Returns (x + y, x_len) — the returned length is the length of the FIRST input.
    """
    assert x.shape == y.shape, "Add2D requires matching shapes"
    B, D = x.shape

    # Keep dtypes consistent (avoid in-kernel promotion surprises).
    out_dtype = jnp.result_type(x.dtype, y.dtype)
    x = x.astype(out_dtype)
    y = y.astype(out_dtype)
    itemsize = jnp.dtype(out_dtype).itemsize
    total = B * D
    total_bytes = total * itemsize

    # ---- Tiny-input bypass: pallas_call launch + pipeline prologue dominates ----
    if total_bytes < min_pallas_bytes:
        return x + y, x_len

    is_v7x, vmem_cap = _tpu_generation()

    # dtype-aware packing constants
    width_scale = max(1, 4 // itemsize)      # 1 f32, 2 bf16, 4 int8/fp8
    sub = 8 * width_scale                    # packed-sublane multiple (8/16/32)
    max_tile_d = 2048 * width_scale          # lane-dim cap, multiple of 128
    # per-array tile target in BYTES (mem-bound: big tiles, within VMEM caps)
    target_tile_bytes = (2 if is_v7x else 4) * 1024 * 1024

    # ---- Lane-dense reshape for small / non-128-multiple D ----
    kx, ky = x, y
    reshaped = False
    if (D < 512) or (D % 128 != 0):
        L = 0
        cand = max_tile_d
        while cand >= 128:
            if cand <= total and total % cand == 0:
                L = cand
                break
            cand -= 128
        if L and ((D % 128 != 0) or (L > D)):
            kx = x.reshape(total // L, L)
            ky = y.reshape(total // L, L)
            reshaped = True
    Bk, Dk = kx.shape

    # ---- Tile selection (bytes-targeted, lane-dense) ----
    # td: full extent if it fits, else a wide multiple of 128 (edge blocks masked).
    td = Dk if Dk <= max_tile_d else max_tile_d
    tb_target = max(sub, target_tile_bytes // (td * itemsize))
    tb = Bk if Bk <= tb_target else max(sub, _round_down(tb_target, sub))

    gb = pl.cdiv(Bk, tb)
    gd = pl.cdiv(Dk, td)

    # ---- v7x only: 2 TensorCores -> prefer an even number of parallel blocks ----
    if is_v7x and (gb * gd) % 2 == 1:
        new_tb = _round_up(-(-Bk // (gb + 1)), sub)   # ceil(Bk/(gb+1)) rounded to sublane pack
        if new_tb >= sub:
            new_gb = pl.cdiv(Bk, new_tb)
            if new_gb % 2 == 0:
                tb, gb = new_tb, new_gb

    # ---- VMEM budget: double buffer x 3 streams (x, y, out), generation-aware cap ----
    tile_bytes = tb * td * itemsize
    needed = 2 * 3 * tile_bytes
    cap = (40 if is_v7x else 64) * 1024 * 1024
    if vmem_cap is not None:
        cap = min(cap, max(32 * 1024 * 1024, vmem_cap // 2))
    vmem_limit = int(min(cap, max(16 * 1024 * 1024, needed + (8 << 20))))

    # ---- Grid / specs ----
    if gd == 1:
        grid = (gb,)
        in_specs = [
            pl.BlockSpec((tb, td), lambda i: (i, 0)),
            pl.BlockSpec((tb, td), lambda i: (i, 0)),
        ]
        out_specs = pl.BlockSpec((tb, td), lambda i: (i, 0))
        dims = ("parallel",)
    else:
        grid = (gb, gd)
        in_specs = [
            pl.BlockSpec((tb, td), lambda i, j: (i, j)),
            pl.BlockSpec((tb, td), lambda i, j: (i, j)),
        ]
        out_specs = pl.BlockSpec((tb, td), lambda i, j: (i, j))
        dims = ("parallel", "parallel")

    cost = pl.CostEstimate(
        flops=total, transcendentals=0, bytes_accessed=3 * total_bytes
    )

    out = pl.pallas_call(
        _add2d_kernel,
        out_shape=jax.ShapeDtypeStruct((Bk, Dk), out_dtype),
        grid=grid,
        in_specs=in_specs,
        out_specs=out_specs,
        compiler_params=pltpu.CompilerParams(
            dimension_semantics=dims,
            vmem_limit_bytes=vmem_limit,
        ),
        cost_estimate=cost,
    )(kx, ky)

    if reshaped:
        out = out.reshape(B, D)

    # Passthrough of the first input's lengths (pure glue, no compute).
    # TODO(synk): lengths are not used to mask the add (matches the reference module).
    return out, x_len


if __name__ == "__main__":
    key = jax.random.PRNGKey(0)
    k1, k2, k3, k4, k5, k6 = jax.random.split(key, 6)

    # Case 1: small [batch_size, dim] consistent with the module. Force the
    # Pallas path (default tiny-input bypass would otherwise use pure XLA).
    batch_size, dim = 8, 128
    x = jax.random.normal(k1, (batch_size, dim), dtype=jnp.float32)
    y = jax.random.normal(k2, (batch_size, dim), dtype=jnp.float32)
    x_len = jnp.full((batch_size,), dim, dtype=jnp.int32)
    out, out_len = add2d(x, y, x_len, min_pallas_bytes=0)
    jax.block_until_ready(out)
    jax.block_until_ready(out_len)
    assert jnp.allclose(out, x + y, atol=1e-6), "mismatch vs reference (small case)"
    assert out_len.shape == (batch_size,)

    # Case 2: ragged batch + narrow D -> exercises the lane-dense reshape path.
    b2, d2 = 272, 384
    x2 = jax.random.normal(k3, (b2, d2), dtype=jnp.float32)
    y2 = jax.random.normal(k4, (b2, d2), dtype=jnp.float32)
    len2 = jnp.full((b2,), d2, dtype=jnp.int32)
    out2, out2_len = add2d(x2, y2, len2)
    jax.block_until_ready(out2)
    assert jnp.allclose(out2, x2 + y2, atol=1e-6), "mismatch vs reference (reshape case)"
    assert out2_len.shape == (b2,)

    # Case 3: wide 128-multiple D, bf16 -> direct (B, D) tiling + packed-sublane path.
    b3, d3 = 304, 640
    x3 = jax.random.normal(k5, (b3, d3), dtype=jnp.bfloat16)
    y3 = jax.random.normal(k6, (b3, d3), dtype=jnp.bfloat16)
    len3 = jnp.full((b3,), d3, dtype=jnp.int32)
    out3, out3_len = add2d(x3, y3, len3)
    jax.block_until_ready(out3)
    assert jnp.allclose(
        out3.astype(jnp.float32), (x3 + y3).astype(jnp.float32), atol=1e-2
    ), "mismatch vs reference (bf16 case)"
    assert out3_len.shape == (b3,)

    # Case 4: tiny input goes through the jnp bypass by default.
    out4, _ = add2d(x, y, x_len)
    jax.block_until_ready(out4)
    assert jnp.allclose(out4, x + y, atol=1e-6), "mismatch vs reference (bypass case)"

    print("KERNEL_OK")
</pallas_src>

<mosaic_0001>
module attributes {stable_mosaic.version = 11 : i64} {
  func.func @_add2d_kernel(%arg0: i32, %arg1: memref<1x1024xf32, #tpu.memory_space<vmem>>, %arg2: memref<1x1024xf32, #tpu.memory_space<vmem>>, %arg3: memref<1x1024xf32, #tpu.memory_space<vmem>>) attributes {dimension_semantics = [#tpu.dimension_semantics<parallel>], iteration_bounds = array<i64: 1>, scalar_prefetch = 0 : i64, scratch_operands = 0 : i64, tpu.core_type = #tpu.core_type<tc>, window_params = [{transform_indices = @transform_0, window_bounds = array<i64: 1, 1024>}, {transform_indices = @transform_1, window_bounds = array<i64: 1, 1024>}, {transform_indices = @transform_2, window_bounds = array<i64: 1, 1024>}]} {
    %c0 = arith.constant 0 : index
    %c0_0 = arith.constant 0 : index
    %0 = vector.load %arg1[%c0, %c0_0] : memref<1x1024xf32, #tpu.memory_space<vmem>>, vector<1x1024xf32>
    %c0_1 = arith.constant 0 : index
    %c0_2 = arith.constant 0 : index
    %1 = vector.load %arg2[%c0_1, %c0_2] : memref<1x1024xf32, #tpu.memory_space<vmem>>, vector<1x1024xf32>
    %2 = arith.addf %0, %1 : vector<1x1024xf32>
    %c0_3 = arith.constant 0 : index
    %c0_4 = arith.constant 0 : index
    %3 = vector.load %arg3[%c0_3, %c0_4] : memref<1x1024xf32, #tpu.memory_space<vmem>>, vector<1x1024xf32>
    tpu.vector_store %arg3[%c0_3, %c0_4], %2 {strides = array<i32>} : memref<1x1024xf32, #tpu.memory_space<vmem>>, vector<1x1024xf32>,
    return
  }
  func.func @transform_0(%arg0: i32) -> (i32, i32) {
    %c0_i32 = arith.constant 0 : i32
    %c0_i32_0 = arith.constant 0 : i32
    return %arg0, %c0_i32 : i32, i32
  }
  func.func @transform_1(%arg0: i32) -> (i32, i32) {
    %c0_i32 = arith.constant 0 : i32
    %c0_i32_0 = arith.constant 0 : i32
    return %arg0, %c0_i32 : i32, i32
  }
  func.func @transform_2(%arg0: i32) -> (i32, i32) {
    %c0_i32 = arith.constant 0 : i32
    %c0_i32_0 = arith.constant 0 : i32
    return %arg0, %c0_i32 : i32, i32
  }
}

</mosaic_0001>

<llo_original>
// kernel: tpu_custom_call.1
$region0: #{tpu_custom_call.1}
  #allocation0 [shape = 'u32[]', space=smem, size = 0x4, offset = 0x4, fixed_abs, tag = 'smem constant byte address 0x4 - core index']
  #allocation1 [shape = 'u32[144,128]{1,0:T(1,128)}', space=vmem, size = 0x12000, scoped, tag = 'internal scratch']
  %s0 = inlined_call_operand.hbm [shape: f32[1,1024], index: 0, kind: input, shape index: {}]
  %s1 = inlined_call_operand.hbm [shape: f32[1,1024], index: 1, kind: input, shape index: {}]
  %s2 = inlined_call_operand.hbm [shape: f32[1,1024], index: 2, kind: output, shape index: {}]
  %s3 = sld [smem:[#allocation0]]
  $region26: #{tpu_custom_call.1} parent=0
    _
  %s5 = ssub.s32 1, %s3
  %s6 = scalar_select 0, %s5, %s3
  $region1: #{tpu_custom_call.1} parent=0
    #allocation2 [shape = 'u8[4096]{0}', space=vmem, size = 0x1000, scoped, tag = 'input window, operand 0, single buffered']
    #allocation3 [shape = 's32[1]{0}', space=sflag, size = 0x4, scoped, tag = 'scoped memory for tpu_custom_call.1']
    #allocation4 [shape = 's32[1]{0}', space=sflag, size = 0x4, scoped, tag = 'scoped memory for tpu_custom_call.1']
    #allocation5 [shape = 'u8[4096]{0}', space=vmem, size = 0x1000, scoped, tag = 'input window, operand 1, single buffered']
    #allocation6 [shape = 's32[1]{0}', space=sflag, size = 0x4, scoped, tag = 'scoped memory for tpu_custom_call.1']
    #allocation7 [shape = 'u8[4096]{0}', space=vmem, size = 0x1000, scoped, tag = 'output window, operand 0, single buffered']
    %7 = vsyncpa [#allocation3], 0
    %8 = vsyncpa [#allocation6], 0
    %9 = vsyncpa [#allocation4], 0
    // Predicated region
    $region2: #{tpu_custom_call.1} parent=1 // pred_check
      _
    $region3: #{tpu_custom_call.1} parent=1 // pred_check_branch
      %11 = sbr.rel (0) target = $region5
    $region4: #{tpu_custom_call.1} parent=1 // pred_region
      %s13 = ssub.s32 128, 128
      %14 = vsyncadd [#allocation3], %s13
      %s16 = sshll.u32 [#allocation2], 4
      %s17 = int_to_ptr.vmem [resolvable:$true] %s16
      %19 = dma.hbm_to_vmem [thread:$0]  %s0, 128, %s17, [#allocation3]
    $region5: #{tpu_custom_call.1} parent=1 // pred_fallthru
      _
    // Predicated region
    $region6: #{tpu_custom_call.1} parent=1 // pred_check
      _
    $region7: #{tpu_custom_call.1} parent=1 // pred_check_branch
      %21 = sbr.rel (0) target = $region9
    $region8: #{tpu_custom_call.1} parent=1 // pred_region
      %s23 = ssub.s32 128, 128
      %24 = vsyncadd [#allocation6], %s23
      %s26 = sshll.u32 [#allocation5], 4
      %s27 = int_to_ptr.vmem [resolvable:$true] %s26
      %29 = dma.hbm_to_vmem [thread:$0]  %s1, 128, %s27, [#allocation6]
    $region9: #{tpu_custom_call.1} parent=1 // pred_fallthru
      _
    // Predicated region
    $region10: #{tpu_custom_call.1} parent=1 // pred_check
      _
    $region11: #{tpu_custom_call.1} parent=1 // pred_check_branch
      %31 = sbr.rel (0) target = $region13
    $region12: #{tpu_custom_call.1} parent=1 // pred_region
      %32 = dma.done [#allocation3], 128
    $region13: #{tpu_custom_call.1} parent=1 // pred_fallthru
      _
    // Predicated region
    $region14: #{tpu_custom_call.1} parent=1 // pred_check
      _
    $region15: #{tpu_custom_call.1} parent=1 // pred_check_branch
      %34 = sbr.rel (0) target = $region17
    $region16: #{tpu_custom_call.1} parent=1 // pred_region
      %35 = dma.done [#allocation6], 128
    $region17: #{tpu_custom_call.1} parent=1 // pred_fallthru
      _
    %v36 = vld [vmem:[#allocation2] sm:$0xff]
    %v37 = vld [vmem:[#allocation5] sm:$0xff]
    %v38 = vadd.f32 %v36, %v37
    %39 = vst [vmem:[#allocation7] sm:$0xff] %v38
    // Predicated region
    $region18: #{tpu_custom_call.1} parent=1 // pred_check
      _
    $region19: #{tpu_custom_call.1} parent=1 // pred_check_branch
      %41 = sbr.rel (0) target = $region21
    $region20: #{tpu_custom_call.1} parent=1 // pred_region
      %s43 = ssub.s32 128, 128
      %44 = vsyncadd [#allocation4], %s43
      %s46 = sshll.u32 [#allocation7], 4
      %s47 = int_to_ptr.vmem [resolvable:$true] %s46
      %49 = dma.vmem_to_hbm [thread:$0]  %s47, 128, %s2, [#allocation4]
    $region21: #{tpu_custom_call.1} parent=1 // pred_fallthru
      _
    // Predicated region
    $region22: #{tpu_custom_call.1} parent=1 // pred_check
      _
    $region23: #{tpu_custom_call.1} parent=1 // pred_check_branch
      %51 = sbr.rel (0) target = $region25
    $region24: #{tpu_custom_call.1} parent=1 // pred_region
      %52 = dma.done [#allocation4], 128
    $region25: #{tpu_custom_call.1} parent=1 // pred_fallthru
      _
    %53 = vsyncpa [#allocation3], 1
    %54 = vsyncpa [#allocation6], 1
    %55 = vsyncpa [#allocation4], 1

</llo_original>
